<compile_context>
chip_gen: v5e
topology: v5e:2x2
jax: 0.10.0
libtpu: 0.0.40
codegen_flags: <defaults>
</compile_context>

<pallas_src>
import functools
import math

import jax
import jax.numpy as jnp
from jax.experimental import pallas as pl
from jax.experimental.pallas import tpu as pltpu


def _floor_div_f32(r, d):
    """Exact r // d for small non-negative integer-valued f32 `r` and python int
    `d`, using f32 mul + floor (no vector integer div/rem needed on the VPU)."""
    return jnp.floor((r + 0.5) * (1.0 / d))


def _attn_kernel(heads, nb, x_ref, w_in_ref, b_in_ref, w_f_ref, b_f_ref, o_ref):
    """One grid step = `nb` batch rows: fused QKV projection -> fused masked
    multi-head attention (heads stacked along sublanes, block-sparse K/V) ->
    fused (out_proj @ linear) + bias + ReLU.  MXU operands are bf16; all
    accumulation and softmax math stays f32."""
    L, _, E = x_ref.shape
    hd = E // heads
    T = nb * L                                    # tokens handled this step
    HT = heads * T                                # stacked (head, token) rows

    # ---- layout-native token flatten: (L, nb, E) -> (T, E), row = l*nb + b ---
    x = x_ref[...].reshape(T, E)

    # ---- fused QKV projection (1/sqrt(hd) pre-folded into the Q columns) -----
    qkv = jnp.dot(x.astype(jnp.bfloat16), w_in_ref[...],
                  preferred_element_type=jnp.float32) + b_in_ref[...]   # (T, 3E)
    q = qkv[:, :E]
    k = qkv[:, E:2 * E]
    v = qkv[:, 2 * E:]

    # ---- 0/1 head-column mask: lane c belongs to head c // hd ----------------
    col = jax.lax.broadcasted_iota(jnp.int32, (heads, E), 1).astype(jnp.float32)
    hrow = jax.lax.broadcasted_iota(jnp.int32, (heads, E), 0).astype(jnp.float32)
    col_mask = (_floor_div_f32(col, hd) == hrow).astype(jnp.float32)[:, None, :]

    # ---- stack heads along sublanes without lane-slice concats ---------------
    # Q rows are plain broadcasts; K/V are block-sparse over head columns, so a
    # single E-wide contraction gives exact per-head scores on the diagonal
    # blocks (off-diagonal blocks are masked below) and the head unstack after
    # the PV matmul is just reshape + sum.
    q_s = jnp.broadcast_to(q[None], (heads, T, E)).reshape(HT, E)
    k_s = (k[None] * col_mask).reshape(HT, E)
    v_s = (v[None] * col_mask).reshape(HT, E)

    # ---- scores + in-kernel block-diagonal (head, batch-row) mask ------------
    s = jax.lax.dot_general(q_s.astype(jnp.bfloat16), k_s.astype(jnp.bfloat16),
                            (((1,), (1,)), ((), ())),
                            preferred_element_type=jnp.float32)          # (HT, HT)
    ri = jax.lax.broadcasted_iota(jnp.int32, (HT, HT), 0).astype(jnp.float32)
    rj = jax.lax.broadcasted_iota(jnp.int32, (HT, HT), 1).astype(jnp.float32)
    same_head = _floor_div_f32(ri, T) == _floor_div_f32(rj, T)
    same_batch = ((ri - nb * _floor_div_f32(ri, nb)) ==
                  (rj - nb * _floor_div_f32(rj, nb)))
    s = jnp.where(same_head & same_batch, s, -1e30)

    # ---- softmax with deferred (post-PV) normalization ------------------------
    s = s - jnp.max(s, axis=-1, keepdims=True)
    p = jnp.exp(s)
    denom = jnp.sum(p, axis=-1, keepdims=True)
    pv = jnp.dot(p.astype(jnp.bfloat16), v_s.astype(jnp.bfloat16),
                 preferred_element_type=jnp.float32)                     # (HT, E)
    pv = pv * pl.reciprocal(denom, approx=True)

    # ---- head unstack = sum over the block-sparse head axis -> (T, E) --------
    o = pv.reshape(heads, T, E).sum(axis=0)

    # ---- fused (out_proj @ linear) + bias + ReLU, one lane-dense store -------
    y = jnp.dot(o.astype(jnp.bfloat16), w_f_ref[...],
                preferred_element_type=jnp.float32) + b_f_ref[...]       # (T, OUT)
    o_ref[...] = jnp.maximum(y, 0.0)


def _pick_batch_block(n_batch, seq_len, heads):
    """Batch rows per grid step.  The (L, nb, E) input block puts nb on the
    sublane axis, so nb must equal the (padded) batch or be a multiple of 8.
    Caps the fused stacked size HT = heads*nb*L near 256 (one v6e/v7x MXU tile;
    2x2 tiles on v5e) and keeps >= 2 grid steps when the batch allows it so both
    v7x TensorCores get work on the 'parallel' batch axis."""
    if n_batch <= 8:
        return n_batch                     # single step; tiny N accepts one TC
    # n_batch is a multiple of 8 here (the wrapper pads otherwise).
    cap = max(8, (256 // max(1, heads * seq_len)) // 8 * 8)
    nb = min(cap, n_batch)
    while nb > 8 and n_batch % nb != 0:
        nb -= 8
    if nb == n_batch and n_batch >= 16:
        half = n_batch // 2
        nb = half if half % 8 == 0 else 8  # >= 2 parallel steps for the megacore
    return nb


def _vmem_limit_bytes(seq_len, nb, embed, out_dim, heads):
    """Rough per-step VMEM footprint; only raises the scoped limit when the
    default (32 MiB) would not fit (v7x has 64 MiB physical VMEM)."""
    T = nb * seq_len
    HT = heads * T
    blocks = 2 * 4 * (seq_len * nb * embed + T * out_dim)      # dbl-buffered x/out
    weights = 2 * (2 * embed * 3 * embed + 4 * 3 * embed
                   + 2 * embed * out_dim + 4 * out_dim)
    interm = 4 * (T * 3 * embed + 4 * HT * embed + 3 * HT * HT + T * out_dim)
    est = 2 * (blocks + weights + interm)                      # 2x headroom
    if est <= 32 * 1024 * 1024:
        return None                                            # default is fine
    return int(min(est, 100 * 1024 * 1024))


def audio_self_attention(x_lne, params, heads):
    """x_lne: (L, N, E) float32 (torch MultiheadAttention batch_first=False layout).
    Returns relu(linear(attention(x, x, x))) of shape (L, N, 256)."""
    w_in, b_in, w_out, b_out, w_lin, b_lin = params
    L, N, E = x_lne.shape
    OUT = w_lin.shape[0]
    hd = E // heads
    assert heads * hd == E, "embed_dim must be divisible by heads"

    # Pad ragged batches to a multiple of 8 so a bounded batch group (not the
    # whole batch) sits on the sublane axis of each block.
    N_pad = N if (N <= 8 or N % 8 == 0) else ((N + 7) // 8) * 8
    if N_pad != N:
        x_lne = jnp.pad(x_lne, ((0, 0), (0, N_pad - N), (0, 0)))

    nb = _pick_batch_block(N_pad, L, heads)
    G = N_pad // nb
    T = nb * L

    # ---- one-time weight prep: fold 1/sqrt(hd) into Q, fuse out_proj @ linear
    # (f32 math, single bf16 cast), pre-transpose so the kernel has no .T ------
    scale = 1.0 / math.sqrt(hd)
    w_in_f = w_in.astype(jnp.float32).at[:E].multiply(scale)
    b_in_f = b_in.astype(jnp.float32).at[:E].multiply(scale)
    w_in_t = w_in_f.T.astype(jnp.bfloat16)                     # (E, 3E)
    b_in2 = b_in_f.reshape(1, 3 * E)

    w_lin_t = w_lin.astype(jnp.float32).T                      # (E, OUT)
    w_fused = (w_out.astype(jnp.float32).T @ w_lin_t).astype(jnp.bfloat16)  # (E, OUT)
    b_fused = (b_out.astype(jnp.float32) @ w_lin_t
               + b_lin.astype(jnp.float32)).reshape(1, OUT)

    kernel = functools.partial(_attn_kernel, heads, nb)

    # TODO(synk): for long audio (L in the hundreds+) tile the KV axis
    # flash-style instead of materializing the (heads*nb*L)^2 score block.
    out = pl.pallas_call(
        kernel,
        out_shape=jax.ShapeDtypeStruct((G, T, OUT), jnp.float32),
        grid=(G,),
        in_specs=[
            pl.BlockSpec((L, nb, E), lambda g: (0, g, 0)),     # x, native (L, N, E)
            pl.BlockSpec((E, 3 * E), lambda g: (0, 0)),        # in_proj weight^T (bf16, Q pre-scaled)
            pl.BlockSpec((1, 3 * E), lambda g: (0, 0)),        # in_proj bias (Q pre-scaled)
            pl.BlockSpec((E, OUT), lambda g: (0, 0)),          # fused out_proj@linear weight (bf16)
            pl.BlockSpec((1, OUT), lambda g: (0, 0)),          # fused bias
        ],
        out_specs=pl.BlockSpec((None, T, OUT), lambda g: (g, 0, 0)),
        compiler_params=pltpu.CompilerParams(
            dimension_semantics=("parallel",),
            vmem_limit_bytes=_vmem_limit_bytes(L, nb, E, OUT, heads)),
    )(x_lne, w_in_t, b_in2, w_fused, b_fused)

    # (G, L*nb, OUT) -> (L, N, OUT).  For G == 1 this is a free row-major reshape.
    if G == 1:
        y = out.reshape(L, N_pad, OUT)
    else:
        y = jnp.transpose(out.reshape(G, L, nb, OUT), (1, 0, 2, 3)).reshape(L, N_pad, OUT)
    return y if N_pad == N else y[:, :N, :]


def _reference(x_lne, params, heads):
    """Pure-JAX f32 reference mirroring torch.nn.MultiheadAttention + Linear + ReLU."""
    w_in, b_in, w_out, b_out, w_lin, b_lin = params
    L, N, E = x_lne.shape
    hd = E // heads
    x = jnp.transpose(x_lne, (1, 0, 2))                              # (N, L, E)
    qkv = jnp.einsum('nle,fe->nlf', x, w_in) + b_in                  # (N, L, 3E)
    q, k, v = qkv[..., :E], qkv[..., E:2 * E], qkv[..., 2 * E:]

    def split(t):  # (N, L, E) -> (N, H, L, hd)
        return jnp.transpose(t.reshape(N, L, heads, hd), (0, 2, 1, 3))

    qh, kh, vh = split(q) / math.sqrt(hd), split(k), split(v)
    s = jnp.einsum('nhqd,nhkd->nhqk', qh, kh)
    p = jax.nn.softmax(s, axis=-1)
    o = jnp.einsum('nhqk,nhkd->nhqd', p, vh)                         # (N, H, L, hd)
    o = jnp.transpose(o, (0, 2, 1, 3)).reshape(N, L, E)
    attn = jnp.einsum('nle,fe->nlf', o, w_out) + b_out
    y = jnp.maximum(jnp.einsum('nle,fe->nlf', attn, w_lin) + b_lin, 0.0)
    return jnp.transpose(y, (1, 0, 2))


if __name__ == "__main__":
    L, N, E, HEADS, OUT = 8, 2, 32, 4, 256

    key = jax.random.PRNGKey(0)
    kx, k1, k2, k3, k4, k5, k6 = jax.random.split(key, 7)

    x = jax.random.normal(kx, (L, N, E), jnp.float32)

    # Deterministic parameter init (shapes match nn.MultiheadAttention / nn.Linear).
    w_in = jax.random.normal(k1, (3 * E, E), jnp.float32) * 0.1      # in_proj_weight
    b_in = jax.random.normal(k2, (3 * E,), jnp.float32) * 0.1        # in_proj_bias
    w_out = jax.random.normal(k3, (E, E), jnp.float32) * 0.1         # out_proj.weight
    b_out = jax.random.normal(k4, (E,), jnp.float32) * 0.1           # out_proj.bias
    w_lin = jax.random.normal(k5, (OUT, E), jnp.float32) * 0.1       # linear.weight
    b_lin = jax.random.normal(k6, (OUT,), jnp.float32) * 0.1         # linear.bias

    params = (w_in, b_in, w_out, b_out, w_lin, b_lin)

    out = jax.block_until_ready(audio_self_attention(x, params, HEADS))
    ref = _reference(x, params, HEADS)

    assert out.shape == (L, N, OUT), out.shape
    # bf16 MXU operands, fused (f32) out_proj@linear weight and approx reciprocal
    # => relaxed tolerance against the pure-f32 reference.
    err = float(jnp.max(jnp.abs(out - ref)))
    assert jnp.allclose(out, ref, atol=5e-2, rtol=5e-2), err

    print("KERNEL_OK")
</pallas_src>

<mosaic_0001>
module attributes {stable_mosaic.version = 11 : i64} {
  func.func @_attn_kernel(%arg0: i32, %arg1: memref<8x2x32xf32, #tpu.memory_space<vmem>>, %arg2: memref<32x96xbf16, #tpu.memory_space<vmem>>, %arg3: memref<1x96xf32, #tpu.memory_space<vmem>>, %arg4: memref<32x256xbf16, #tpu.memory_space<vmem>>, %arg5: memref<1x256xf32, #tpu.memory_space<vmem>>, %arg6: memref<1x16x256xf32, #tpu.memory_space<vmem>>) attributes {dimension_semantics = [#tpu.dimension_semantics<parallel>], iteration_bounds = array<i64: 1>, scalar_prefetch = 0 : i64, scratch_operands = 0 : i64, tpu.core_type = #tpu.core_type<tc>, window_params = [{transform_indices = @transform_0, window_bounds = array<i64: 8, 2, 32>}, {pipeline_mode = #tpu.pipeline_mode<synchronous>, transform_indices = @transform_1, window_bounds = array<i64: 32, 96>}, {pipeline_mode = #tpu.pipeline_mode<synchronous>, transform_indices = @transform_2, window_bounds = array<i64: 1, 96>}, {pipeline_mode = #tpu.pipeline_mode<synchronous>, transform_indices = @transform_3, window_bounds = array<i64: 32, 256>}, {pipeline_mode = #tpu.pipeline_mode<synchronous>, transform_indices = @transform_4, window_bounds = array<i64: 1, 256>}, {transform_indices = @transform_5, window_bounds = array<i64: 1, 16, 256>}]} {
    %c0 = arith.constant 0 : index
    %c0_0 = arith.constant 0 : index
    %c0_1 = arith.constant 0 : index
    %0 = vector.load %arg1[%c0, %c0_0, %c0_1] : memref<8x2x32xf32, #tpu.memory_space<vmem>>, vector<8x2x32xf32>
    %1 = vector.shape_cast %0 : vector<8x2x32xf32> to vector<16x32xf32>
    %2 = arith.truncf %1 : vector<16x32xf32> to vector<16x32xbf16>
    %c0_2 = arith.constant 0 : index
    %c0_3 = arith.constant 0 : index
    %3 = vector.load %arg2[%c0_2, %c0_3] : memref<32x96xbf16, #tpu.memory_space<vmem>>, vector<32x96xbf16>
    %cst = arith.constant dense<0.000000e+00> : vector<16x96xf32>
    %4 = tpu.matmul %2, %3, %cst {dimension_numbers = #tpu.dot_dimension_numbers<[1], [0], [0], [1], [0, 0, 1, 1], [], []>} : vector<16x32xbf16>, vector<32x96xbf16>, vector<16x96xf32> -> vector<16x96xf32>
    %c0_4 = arith.constant 0 : index
    %c0_5 = arith.constant 0 : index
    %5 = vector.load %arg3[%c0_4, %c0_5] : memref<1x96xf32, #tpu.memory_space<vmem>>, vector<1x96xf32>
    %6 = vector.broadcast %5 : vector<1x96xf32> to vector<16x96xf32>
    %7 = arith.addf %4, %6 : vector<16x96xf32>
    %8 = vector.extract_strided_slice %7 {offsets = [0, 0], sizes = [16, 32], strides = [1, 1]} : vector<16x96xf32> to vector<16x32xf32>
    %9 = vector.extract_strided_slice %7 {offsets = [0, 32], sizes = [16, 32], strides = [1, 1]} : vector<16x96xf32> to vector<16x32xf32>
    %10 = vector.extract_strided_slice %7 {offsets = [0, 64], sizes = [16, 32], strides = [1, 1]} : vector<16x96xf32> to vector<16x32xf32>
    %11 = tpu.iota {dimensions = array<i32: 1>} : vector<4x32xi32>
    %12 = arith.sitofp %11 : vector<4x32xi32> to vector<4x32xf32>
    %13 = tpu.iota {dimensions = array<i32: 0>} : vector<4x32xi32>
    %14 = arith.sitofp %13 : vector<4x32xi32> to vector<4x32xf32>
    %cst_6 = arith.constant 5.000000e-01 : f32
    %15 = vector.broadcast %cst_6 : f32 to vector<4x32xf32>
    %16 = arith.addf %12, %15 : vector<4x32xf32>
    %cst_7 = arith.constant 1.250000e-01 : f32
    %17 = vector.broadcast %cst_7 : f32 to vector<4x32xf32>
    %18 = arith.mulf %16, %17 : vector<4x32xf32>
    %19 = math.floor %18 : vector<4x32xf32>
    %20 = arith.cmpf oeq, %19, %14 : vector<4x32xf32>
    %21 = arith.extui %20 : vector<4x32xi1> to vector<4x32xi32>
    %22 = arith.sitofp %21 : vector<4x32xi32> to vector<4x32xf32>
    %23 = vector.shape_cast %22 : vector<4x32xf32> to vector<4x1x32xf32>
    %24 = vector.shape_cast %8 : vector<16x32xf32> to vector<1x16x32xf32>
    %25 = vector.shape_cast %24 : vector<1x16x32xf32> to vector<1x16x32xf32>
    %26 = vector.broadcast %25 : vector<1x16x32xf32> to vector<4x16x32xf32>
    %27 = vector.shape_cast %26 : vector<4x16x32xf32> to vector<64x32xf32>
    %28 = vector.shape_cast %9 : vector<16x32xf32> to vector<1x16x32xf32>
    %29 = vector.broadcast %28 : vector<1x16x32xf32> to vector<4x16x32xf32>
    %30 = vector.broadcast %23 : vector<4x1x32xf32> to vector<4x16x32xf32>
    %31 = arith.mulf %29, %30 : vector<4x16x32xf32>
    %32 = vector.shape_cast %31 : vector<4x16x32xf32> to vector<64x32xf32>
    %33 = vector.shape_cast %10 : vector<16x32xf32> to vector<1x16x32xf32>
    %34 = vector.broadcast %33 : vector<1x16x32xf32> to vector<4x16x32xf32>
    %35 = vector.broadcast %23 : vector<4x1x32xf32> to vector<4x16x32xf32>
    %36 = arith.mulf %34, %35 : vector<4x16x32xf32>
    %37 = vector.shape_cast %36 : vector<4x16x32xf32> to vector<64x32xf32>
    %38 = arith.truncf %27 : vector<64x32xf32> to vector<64x32xbf16>
    %39 = arith.truncf %32 : vector<64x32xf32> to vector<64x32xbf16>
    %cst_8 = arith.constant dense<0.000000e+00> : vector<64x64xf32>
    %40 = tpu.matmul %38, %39, %cst_8 {dimension_numbers = #tpu.dot_dimension_numbers<[1], [1], [0], [0], [0, 0, 1, 0], [], []>} : vector<64x32xbf16>, vector<64x32xbf16>, vector<64x64xf32> -> vector<64x64xf32>
    %41 = tpu.iota {dimensions = array<i32: 0>} : vector<64x64xi32>
    %42 = arith.sitofp %41 : vector<64x64xi32> to vector<64x64xf32>
    %43 = tpu.iota {dimensions = array<i32: 1>} : vector<64x64xi32>
    %44 = arith.sitofp %43 : vector<64x64xi32> to vector<64x64xf32>
    %cst_9 = arith.constant 5.000000e-01 : f32
    %45 = vector.broadcast %cst_9 : f32 to vector<64x64xf32>
    %46 = arith.addf %42, %45 : vector<64x64xf32>
    %cst_10 = arith.constant 6.250000e-02 : f32
    %47 = vector.broadcast %cst_10 : f32 to vector<64x64xf32>
    %48 = arith.mulf %46, %47 : vector<64x64xf32>
    %49 = math.floor %48 : vector<64x64xf32>
    %cst_11 = arith.constant 5.000000e-01 : f32
    %50 = vector.broadcast %cst_11 : f32 to vector<64x64xf32>
    %51 = arith.addf %44, %50 : vector<64x64xf32>
    %cst_12 = arith.constant 6.250000e-02 : f32
    %52 = vector.broadcast %cst_12 : f32 to vector<64x64xf32>
    %53 = arith.mulf %51, %52 : vector<64x64xf32>
    %54 = math.floor %53 : vector<64x64xf32>
    %55 = arith.cmpf oeq, %49, %54 : vector<64x64xf32>
    %cst_13 = arith.constant 5.000000e-01 : f32
    %56 = vector.broadcast %cst_13 : f32 to vector<64x64xf32>
    %57 = arith.addf %42, %56 : vector<64x64xf32>
    %cst_14 = arith.constant 5.000000e-01 : f32
    %58 = vector.broadcast %cst_14 : f32 to vector<64x64xf32>
    %59 = arith.mulf %57, %58 : vector<64x64xf32>
    %60 = math.floor %59 : vector<64x64xf32>
    %cst_15 = arith.constant 2.000000e+00 : f32
    %61 = vector.broadcast %cst_15 : f32 to vector<64x64xf32>
    %62 = arith.mulf %61, %60 : vector<64x64xf32>
    %63 = arith.subf %42, %62 : vector<64x64xf32>
    %cst_16 = arith.constant 5.000000e-01 : f32
    %64 = vector.broadcast %cst_16 : f32 to vector<64x64xf32>
    %65 = arith.addf %44, %64 : vector<64x64xf32>
    %cst_17 = arith.constant 5.000000e-01 : f32
    %66 = vector.broadcast %cst_17 : f32 to vector<64x64xf32>
    %67 = arith.mulf %65, %66 : vector<64x64xf32>
    %68 = math.floor %67 : vector<64x64xf32>
    %cst_18 = arith.constant 2.000000e+00 : f32
    %69 = vector.broadcast %cst_18 : f32 to vector<64x64xf32>
    %70 = arith.mulf %69, %68 : vector<64x64xf32>
    %71 = arith.subf %44, %70 : vector<64x64xf32>
    %72 = arith.cmpf oeq, %63, %71 : vector<64x64xf32>
    %73 = arith.andi %55, %72 : vector<64x64xi1>
    %cst_19 = arith.constant -1.000000e+30 : f32
    %74 = vector.broadcast %cst_19 : f32 to vector<64x64xf32>
    %75 = arith.select %73, %40, %74 : vector<64x64xi1>, vector<64x64xf32>
    %cst_20 = arith.constant dense<0xFF800000> : vector<64xf32>
    %76 = vector.multi_reduction <maximumf>, %75, %cst_20 [1] : vector<64x64xf32> to vector<64xf32>
    %77 = vector.shape_cast %76 : vector<64xf32> to vector<64x1xf32>
    %78 = vector.broadcast %77 : vector<64x1xf32> to vector<64x64xf32>
    %79 = arith.subf %75, %78 : vector<64x64xf32>
    %80 = math.exp %79 : vector<64x64xf32>
    %cst_21 = arith.constant dense<0.000000e+00> : vector<64xf32>
    %81 = vector.multi_reduction <add>, %80, %cst_21 [1] : vector<64x64xf32> to vector<64xf32>
    %82 = vector.shape_cast %81 : vector<64xf32> to vector<64x1xf32>
    %83 = arith.truncf %80 : vector<64x64xf32> to vector<64x64xbf16>
    %84 = arith.truncf %37 : vector<64x32xf32> to vector<64x32xbf16>
    %cst_22 = arith.constant dense<0.000000e+00> : vector<64x32xf32>
    %85 = tpu.matmul %83, %84, %cst_22 {dimension_numbers = #tpu.dot_dimension_numbers<[1], [0], [0], [1], [0, 0, 1, 1], [], []>} : vector<64x64xbf16>, vector<64x32xbf16>, vector<64x32xf32> -> vector<64x32xf32>
    %86 = tpu.reciprocal %82 {approx = true} : vector<64x1xf32> -> vector<64x1xf32>
    %87 = vector.broadcast %86 : vector<64x1xf32> to vector<64x32xf32>
    %88 = arith.mulf %85, %87 : vector<64x32xf32>
    %89 = vector.shape_cast %88 : vector<64x32xf32> to vector<4x16x32xf32>
    %cst_23 = arith.constant dense<0.000000e+00> : vector<16x32xf32>
    %90 = vector.multi_reduction <add>, %89, %cst_23 [0] : vector<4x16x32xf32> to vector<16x32xf32>
    %91 = arith.truncf %90 : vector<16x32xf32> to vector<16x32xbf16>
    %c0_24 = arith.constant 0 : index
    %c0_25 = arith.constant 0 : index
    %92 = vector.load %arg4[%c0_24, %c0_25] : memref<32x256xbf16, #tpu.memory_space<vmem>>, vector<32x256xbf16>
    %cst_26 = arith.constant dense<0.000000e+00> : vector<16x256xf32>
    %93 = tpu.matmul %91, %92, %cst_26 {dimension_numbers = #tpu.dot_dimension_numbers<[1], [0], [0], [1], [0, 0, 1, 1], [], []>} : vector<16x32xbf16>, vector<32x256xbf16>, vector<16x256xf32> -> vector<16x256xf32>
    %c0_27 = arith.constant 0 : index
    %c0_28 = arith.constant 0 : index
    %94 = vector.load %arg5[%c0_27, %c0_28] : memref<1x256xf32, #tpu.memory_space<vmem>>, vector<1x256xf32>
    %95 = vector.broadcast %94 : vector<1x256xf32> to vector<16x256xf32>
    %96 = arith.addf %93, %95 : vector<16x256xf32>
    %cst_29 = arith.constant 0.000000e+00 : f32
    %97 = vector.broadcast %cst_29 : f32 to vector<16x256xf32>
    %98 = arith.maximumf %96, %97 : vector<16x256xf32>
    %c0_30 = arith.constant 0 : index
    %c0_31 = arith.constant 0 : index
    %c0_32 = arith.constant 0 : index
    %99 = vector.load %arg6[%c0_30, %c0_31, %c0_32] : memref<1x16x256xf32, #tpu.memory_space<vmem>>, vector<1x16x256xf32>
    %100 = vector.shape_cast %99 : vector<1x16x256xf32> to vector<16x256xf32>
    %101 = vector.shape_cast %98 : vector<16x256xf32> to vector<1x16x256xf32>
    tpu.vector_store %arg6[%c0_30, %c0_31, %c0_32], %101 {strides = array<i32>} : memref<1x16x256xf32, #tpu.memory_space<vmem>>, vector<1x16x256xf32>,
    return
  }
  func.func @transform_0(%arg0: i32) -> (i32, i32, i32) {
    %c0_i32 = arith.constant 0 : i32
    %c0_i32_0 = arith.constant 0 : i32
    %c0_i32_1 = arith.constant 0 : i32
    return %c0_i32, %arg0, %c0_i32_0 : i32, i32, i32
  }
  func.func @transform_1(%arg0: i32) -> (i32, i32) {
    %c0_i32 = arith.constant 0 : i32
    %c0_i32_0 = arith.constant 0 : i32
    %c0_i32_1 = arith.constant 0 : i32
    return %c0_i32, %c0_i32_0 : i32, i32
  }
  func.func @transform_2(%arg0: i32) -> (i32, i32) {
    %c0_i32 = arith.constant 0 : i32
    %c0_i32_0 = arith.constant 0 : i32
    %c0_i32_1 = arith.constant 0 : i32
    return %c0_i32, %c0_i32_0 : i32, i32
  }
  func.func @transform_3(%arg0: i32) -> (i32, i32) {
    %c0_i32 = arith.constant 0 : i32
    %c0_i32_0 = arith.constant 0 : i32
    %c0_i32_1 = arith.constant 0 : i32
    return %c0_i32, %c0_i32_0 : i32, i32
  }
  func.func @transform_4(%arg0: i32) -> (i32, i32) {
    %c0_i32 = arith.constant 0 : i32
    %c0_i32_0 = arith.constant 0 : i32
    %c0_i32_1 = arith.constant 0 : i32
    return %c0_i32, %c0_i32_0 : i32, i32
  }
  func.func @transform_5(%arg0: i32) -> (i32, i32, i32) {
    %c0_i32 = arith.constant 0 : i32
    %c0_i32_0 = arith.constant 0 : i32
    %c0_i32_1 = arith.constant 0 : i32
    return %arg0, %c0_i32, %c0_i32_0 : i32, i32, i32
  }
}

</mosaic_0001>

<llo_original>
// kernel: tpu_custom_call.1
$region0: #{tpu_custom_call.1}
  #allocation0 [shape = 'u32[]', space=smem, size = 0x4, offset = 0x4, fixed_abs, tag = 'smem constant byte address 0x4 - core index']
  #allocation1 [shape = 'u32[72,128]{1,0:T(1,128)}', space=vmem, size = 0x9000, scoped, tag = 'internal scratch']
  %s0 = inlined_call_operand.hbm [shape: f32[8,2,32], index: 0, kind: input, shape index: {}]
  %s1 = inlined_call_operand.hbm [shape: bf16[32,96], index: 1, kind: input, shape index: {}]
  %s2 = inlined_call_operand.vmem [shape: f32[1,96], index: 2, kind: input, shape index: {}]
  %s3 = inlined_call_operand.hbm [shape: bf16[32,256], index: 3, kind: input, shape index: {}]
  %s4 = inlined_call_operand.vmem [shape: f32[1,256], index: 4, kind: input, shape index: {}]
  %s5 = inlined_call_operand.hbm [shape: f32[1,16,256], index: 5, kind: output, shape index: {}]
  %s6 = sld [smem:[#allocation0]]
  $region42: #{tpu_custom_call.1} parent=0
    _
  %s8 = ssub.s32 1, %s6
  %s9 = scalar_select 0, %s8, %s6
  $region1: #{tpu_custom_call.1} parent=0
    #allocation2 [shape = 'u8[8192]{0}', space=vmem, size = 0x2000, scoped, tag = 'input window, operand 0, single buffered']
    #allocation3 [shape = 's32[1]{0}', space=sflag, size = 0x4, scoped, tag = 'scoped memory for tpu_custom_call.1']
    #allocation4 [shape = 's32[1]{0}', space=sflag, size = 0x4, scoped, tag = 'scoped memory for tpu_custom_call.1']
    #allocation5 [shape = 'u8[8192]{0}', space=vmem, size = 0x2000, scoped, tag = 'input window, operand 1, single buffered']
    #allocation6 [shape = 's32[1]{0}', space=sflag, size = 0x4, scoped, tag = 'scoped memory for tpu_custom_call.1']
    #allocation7 [shape = 'u8[16384]{0}', space=vmem, size = 0x4000, scoped, tag = 'input window, operand 3, single buffered']
    #allocation8 [shape = 'u8[16384]{0}', space=vmem, size = 0x4000, scoped, tag = 'output window, operand 0, single buffered']
    %10 = vsyncpa [#allocation3], 0
    %11 = vsyncpa [#allocation6], 0
    %12 = vsyncpa [#allocation4], 0
    // Predicated region
    $region2: #{tpu_custom_call.1} parent=1 // pred_check
      _
    $region3: #{tpu_custom_call.1} parent=1 // pred_check_branch
      %14 = sbr.rel (0) target = $region5
    $region4: #{tpu_custom_call.1} parent=1 // pred_region
      %16 = vsyncadd [#allocation3], 0
      %s17 = sshll.u32 %s0, 4
      %s18 = int_to_ptr.hbm [resolvable:$true] %s17
      %s19 = sshll.u32 [#allocation2], 4
      %s20 = int_to_ptr.vmem [resolvable:$true] %s19
      %25 = dma.hbm_to_vmem [thread:$0]  %s18, 256, %s20, [#allocation3], 32, 32, 2
    $region5: #{tpu_custom_call.1} parent=1 // pred_fallthru
      _
    // Predicated region
    $region6: #{tpu_custom_call.1} parent=1 // pred_check
      _
    $region7: #{tpu_custom_call.1} parent=1 // pred_check_branch
      %27 = sbr.rel (0) target = $region9
    $region8: #{tpu_custom_call.1} parent=1 // pred_region
      %29 = vsyncadd [#allocation6], 0
      %s30 = sshll.u32 %s1, 4
      %s31 = int_to_ptr.hbm [resolvable:$true] %s30
      %s32 = sshll.u32 [#allocation5], 4
      %s33 = int_to_ptr.vmem [resolvable:$true] %s32
      %38 = dma.hbm_to_vmem [thread:$0]  %s31, 256, %s33, [#allocation6], 64, 64, 4
    $region9: #{tpu_custom_call.1} parent=1 // pred_fallthru
      _
    // Predicated region
    $region10: #{tpu_custom_call.1} parent=1 // pred_check
      _
    $region11: #{tpu_custom_call.1} parent=1 // pred_check_branch
      %40 = sbr.rel (0) target = $region13
    $region12: #{tpu_custom_call.1} parent=1 // pred_region
      _
    $region13: #{tpu_custom_call.1} parent=1 // pred_fallthru
      _
    // Predicated region
    $region14: #{tpu_custom_call.1} parent=1 // pred_check
      _
    $region15: #{tpu_custom_call.1} parent=1 // pred_check_branch
      %42 = sbr.rel (0) target = $region17
    $region16: #{tpu_custom_call.1} parent=1 // pred_region
      %44 = vsyncadd [#allocation6], 0
      %s45 = sshll.u32 %s3, 4
      %s46 = int_to_ptr.hbm [resolvable:$true] %s45
      %s47 = sshll.u32 [#allocation7], 4
      %s48 = int_to_ptr.vmem [resolvable:$true] %s47
      %53 = dma.hbm_to_vmem [thread:$0]  %s46, 512, %s48, [#allocation6], 128, 128, 8
    $region17: #{tpu_custom_call.1} parent=1 // pred_fallthru
      _
    // Predicated region
    $region18: #{tpu_custom_call.1} parent=1 // pred_check
      _
    $region19: #{tpu_custom_call.1} parent=1 // pred_check_branch
      %55 = sbr.rel (0) target = $region21
    $region20: #{tpu_custom_call.1} parent=1 // pred_region
      _
    $region21: #{tpu_custom_call.1} parent=1 // pred_fallthru
      _
    // Predicated region
    $region22: #{tpu_custom_call.1} parent=1 // pred_check
      _
    $region23: #{tpu_custom_call.1} parent=1 // pred_check_branch
      %57 = sbr.rel (0) target = $region25
    $region24: #{tpu_custom_call.1} parent=1 // pred_region
      %59 = dma.done [#allocation3], 256
    $region25: #{tpu_custom_call.1} parent=1 // pred_fallthru
      _
    // Predicated region
    $region26: #{tpu_custom_call.1} parent=1 // pred_check
      _
    $region27: #{tpu_custom_call.1} parent=1 // pred_check_branch
      %61 = sbr.rel (0) target = $region29
    $region28: #{tpu_custom_call.1} parent=1 // pred_region
      %63 = dma.done [#allocation6], 256
    $region29: #{tpu_custom_call.1} parent=1 // pred_fallthru
      _
    // Predicated region
    $region30: #{tpu_custom_call.1} parent=1 // pred_check
      _
    $region31: #{tpu_custom_call.1} parent=1 // pred_check_branch
      %65 = sbr.rel (0) target = $region33
    $region32: #{tpu_custom_call.1} parent=1 // pred_region
      %67 = dma.done [#allocation6], 512
    $region33: #{tpu_custom_call.1} parent=1 // pred_fallthru
      _
    %v69 = vld [vmem:[#allocation2] sm:$0x3]
    %v70 = vld [vmem:[#allocation2 + $0x2] sm:$0x3]
    %v71 = vld [vmem:[#allocation2 + $0x4] sm:$0x3]
    %v72 = vld [vmem:[#allocation2 + $0x6] sm:$0x3]
    %v73 = vld [vmem:[#allocation2 + $0x8] sm:$0x3]
    %v74 = vld [vmem:[#allocation2 + $0xa] sm:$0x3]
    %v75 = vld [vmem:[#allocation2 + $0xc] sm:$0x3]
    %v76 = vld [vmem:[#allocation2 + $0xe] sm:$0x3]
    %85 = vst [vmem:[#allocation1] ss:$4 sm:$0xff] %v69
    %s86 = scalar_lea.vmem [#allocation1], 1
    %87 = vst [vmem:[%s86] ss:$4 sm:$0xff] %v70
    %s88 = scalar_lea.vmem [#allocation1], 2
    %89 = vst [vmem:[%s88] ss:$4 sm:$0xff] %v71
    %s90 = scalar_lea.vmem [#allocation1], 3
    %91 = vst [vmem:[%s90] ss:$4 sm:$0xff] %v72
    %s92 = scalar_lea.vmem [#allocation1], 32
    %93 = vst [vmem:[%s92] ss:$4 sm:$0xff] %v73
    %s94 = scalar_lea.vmem [#allocation1], 33
    %95 = vst [vmem:[%s94] ss:$4 sm:$0xff] %v74
    %s96 = scalar_lea.vmem [#allocation1], 34
    %97 = vst [vmem:[%s96] ss:$4 sm:$0xff] %v75
    %s98 = scalar_lea.vmem [#allocation1], 35
    %99 = vst [vmem:[%s98] ss:$4 sm:$0xff] %v76
    %v100 = vld.sshfl [vmem:[#allocation1] sm:$0xff pattern:$0x73625140]
    %v101 = vld.sshfl [vmem:[#allocation1 + $0x20] sm:$0xff pattern:$0x73625140]
    %v104 = vpack.c.bf16 %v101, %v100
    %v105 = vld [vmem:[#allocation5] sm:$0xf]
    %v106 = vld [vmem:[#allocation5 + $0x4] sm:$0xf]
    %v107 = vld [vmem:[#allocation5 + $0x8] sm:$0xf]
    %v108 = vld [vmem:[#allocation5 + $0xc] sm:$0xf]
    %v109 = vld [vmem:[%s2] sm:$0x1]
    %v111 = vperm.slane %v109, 0
    %v117 = vunpack.c.l.b16 %v105
    %v118 = vunpack.c.l.b16 %v106
    %v119 = vunpack.c.l.b16 %v107
    %v120 = vunpack.c.l.b16 %v108
    %v121 = vpack.c.b16 %v118, %v117
    %v122 = vpack.c.b16 %v120, %v119
    %vm125 = vcmask 261120
    %v127 = vsel %vm125, %v104, 0
    %129 = vmatpush.bf16.msra.mxu0 0
    %130 = vmatpush.bf16.msra.mxu0 0
    %131 = vmatpush.bf16.msra.mxu0 0
    %132 = vmatpush.bf16.msra.mxu0 0
    %133 = vmatpush.bf16.msra.mxu0 0
    %134 = vmatpush.bf16.msra.mxu0 0
    %135 = vmatpush.bf16.msra.mxu0 %v122
    %136 = vmatpush.bf16.msra.mxu0 %v121
    %137 = vmatmul.bf16.gmra.mxu0 %v127
    %v138 = vpop.f32.mrf.mxu0
    %v139 = vadd.f32 %v111, %v138
    %v140 = vpop.f32.mrf.mxu0
    %v141 = vadd.f32 %v111, %v140
    %142 = vdwg.mxu0
    %v143 = vlaneseq
    %v144 = vand.u32 %v143, 127
    %v145 = vcvt.s32.f32 %v144
    %v146 = vlaneseq
    %v147 = vshrl.u32 %v146, 7
    %v148 = vcvt.s32.f32 %v147
    %v149 = vadd.f32 %v145, 0.5
    %v150 = vmul.f32 %v149, 0.125
    %v151 = vfloor.f32 %v150
    %vm152 = vcmp.eq.f32.partialorder %v151, %v148
    %v153 = vsel %vm152, 1, 0
    %v154 = vcvt.s32.f32 %v153
    %v156 = vrot.slane %v154, 1
    %v157 = vrot.slane %v154, 2
    %v158 = vrot.slane %v154, 3
    %v159 = vperm.slane %v154, 0
    %v160 = vperm.slane %v156, 0
    %v161 = vperm.slane %v157, 0
    %v162 = vperm.slane %v158, 0
    %163 = vrot.lane.b32.xlu0 %v159, 32
    %v164 = vpop.permute.xlu0 %163
    %165 = vrot.lane.b32.xlu0 %v160, 32
    %v166 = vpop.permute.xlu0 %165
    %167 = vrot.lane.b32.xlu0 %v161, 32
    %v168 = vpop.permute.xlu0 %167
    %169 = vrot.lane.b32.xlu0 %v162, 32
    %v170 = vpop.permute.xlu0 %169
    %v175 = vmul.f32 %v139, %v164
    %v176 = vmul.f32 %v141, %v164
    %v177 = vmul.f32 %v139, %v166
    %v178 = vmul.f32 %v141, %v166
    %v179 = vmul.f32 %v139, %v168
    %v180 = vmul.f32 %v141, %v168
    %v181 = vmul.f32 %v139, %v170
    %v182 = vmul.f32 %v141, %v170
    %183 = vrot.lane.b32.xlu0 %v159, 64
    %v184 = vpop.permute.xlu0 %183
    %185 = vrot.lane.b32.xlu0 %v160, 64
    %v186 = vpop.permute.xlu0 %185
    %187 = vrot.lane.b32.xlu0 %v161, 64
    %v188 = vpop.permute.xlu0 %187
    %189 = vrot.lane.b32.xlu0 %v162, 64
    %v190 = vpop.permute.xlu0 %189
    %v195 = vmul.f32 %v139, %v184
    %v196 = vmul.f32 %v141, %v184
    %v197 = vmul.f32 %v139, %v186
    %v198 = vmul.f32 %v141, %v186
    %v199 = vmul.f32 %v139, %v188
    %v200 = vmul.f32 %v141, %v188
    %v201 = vmul.f32 %v139, %v190
    %v202 = vmul.f32 %v141, %v190
    %v203 = vpack.c.bf16 %v141, %v139
    %v204 = vpack.c.bf16 %v176, %v175
    %v205 = vpack.c.bf16 %v178, %v177
    %v206 = vpack.c.bf16 %v180, %v179
    %v207 = vpack.c.bf16 %v182, %v181
    %212 = vrot.lane.b32.xlu0 %v204, 96
    %v213 = vpop.permute.xlu0 %212
    %214 = vrot.lane.b32.xlu0 %v205, 96
    %v215 = vpop.permute.xlu0 %214
    %216 = vrot.lane.b32.xlu0 %v206, 96
    %v217 = vpop.permute.xlu0 %216
    %218 = vrot.lane.b32.xlu0 %v207, 96
    %v219 = vpop.permute.xlu0 %218
    %v221 = vsel %vm125, %v203, 0
    %v224 = vsel %vm125, %v213, 0
    %v227 = vsel %vm125, %v215, 0
    %v230 = vsel %vm125, %v217, 0
    %v233 = vsel %vm125, %v219, 0
    %235 = vmatpush.bf16.xpose.msra.mxu0 0
    %236 = vmatpush.bf16.xpose.msra.mxu0 0
    %237 = vmatpush.bf16.xpose.msra.mxu0 0
    %238 = vmatpush.bf16.xpose.msra.mxu0 0
    %239 = vmatpush.bf16.xpose.msra.mxu0 %v233
    %240 = vmatpush.bf16.xpose.msra.mxu0 %v230
    %241 = vmatpush.bf16.xpose.msra.mxu0 %v227
    %242 = vmatpush.bf16.xpose.msra.mxu0 %v224
    %243 = vmatmul.bf16.gmra.mxu0 %v221
    %v244 = vpop.f32.mrf.mxu0
    %v245 = vadd.f32 0.0, %v244
    %v246 = vpop.f32.mrf.mxu0
    %v247 = vadd.f32 0.0, %v246
    %248 = vmatmul.bf16.gmra.mxu0 %v221
    %v249 = vpop.f32.mrf.mxu0
    %v250 = vadd.f32 0.0, %v249
    %v251 = vpop.f32.mrf.mxu0
    %v252 = vadd.f32 0.0, %v251
    %253 = vmatmul.bf16.gmra.mxu0 %v221
    %v254 = vpop.f32.mrf.mxu0
    %v255 = vadd.f32 0.0, %v254
    %v256 = vpop.f32.mrf.mxu0
    %v257 = vadd.f32 0.0, %v256
    %258 = vmatmul.bf16.gmra.mxu0 %v221
    %v259 = vpop.f32.mrf.mxu0
    %v260 = vadd.f32 0.0, %v259
    %v261 = vpop.f32.mrf.mxu0
    %v262 = vadd.f32 0.0, %v261
    %263 = vdwg.mxu0
    %v264 = vadd.s32 %v147, 8
    %v265 = vadd.s32 %v147, 16
    %v266 = vadd.s32 %v147, 24
    %v267 = vadd.s32 %v147, 32
    %v268 = vadd.s32 %v147, 40
    %v269 = vadd.s32 %v147, 48
    %v270 = vadd.s32 %v147, 56
    %v271 = vcvt.s32.f32 %v264
    %v272 = vcvt.s32.f32 %v265
    %v273 = vcvt.s32.f32 %v266
    %v274 = vcvt.s32.f32 %v267
    %v275 = vcvt.s32.f32 %v268
    %v276 = vcvt.s32.f32 %v269
    %v277 = vcvt.s32.f32 %v270
    %v278 = vadd.f32 %v148, 0.5
    %v279 = vadd.f32 %v271, 0.5
    %v280 = vadd.f32 %v272, 0.5
    %v281 = vadd.f32 %v273, 0.5
    %v282 = vadd.f32 %v274, 0.5
    %v283 = vadd.f32 %v275, 0.5
    %v284 = vadd.f32 %v276, 0.5
    %v285 = vadd.f32 %v277, 0.5
    %v286 = vmul.f32 %v278, 0.0625
    %v287 = vmul.f32 %v279, 0.0625
    %v288 = vmul.f32 %v280, 0.0625
    %v289 = vmul.f32 %v281, 0.0625
    %v290 = vmul.f32 %v282, 0.0625
    %v291 = vmul.f32 %v283, 0.0625
    %v292 = vmul.f32 %v284, 0.0625
    %v293 = vmul.f32 %v285, 0.0625
    %v294 = vfloor.f32 %v286
    %v295 = vfloor.f32 %v287
    %v296 = vfloor.f32 %v288
    %v297 = vfloor.f32 %v289
    %v298 = vfloor.f32 %v290
    %v299 = vfloor.f32 %v291
    %v300 = vfloor.f32 %v292
    %v301 = vfloor.f32 %v293
    %v302 = vmul.f32 %v149, 0.0625
    %v303 = vfloor.f32 %v302
    %vm304 = vcmp.eq.f32.partialorder %v294, %v303
    %vm305 = vcmp.eq.f32.partialorder %v295, %v303
    %vm306 = vcmp.eq.f32.partialorder %v296, %v303
    %vm307 = vcmp.eq.f32.partialorder %v297, %v303
    %vm308 = vcmp.eq.f32.partialorder %v298, %v303
    %vm309 = vcmp.eq.f32.partialorder %v299, %v303
    %vm310 = vcmp.eq.f32.partialorder %v300, %v303
    %vm311 = vcmp.eq.f32.partialorder %v301, %v303
    %v312 = vmul.f32 %v278, 0.5
    %v313 = vmul.f32 %v279, 0.5
    %v314 = vmul.f32 %v280, 0.5
    %v315 = vmul.f32 %v281, 0.5
    %v316 = vmul.f32 %v282, 0.5
    %v317 = vmul.f32 %v283, 0.5
    %v318 = vmul.f32 %v284, 0.5
    %v319 = vmul.f32 %v285, 0.5
    %v320 = vfloor.f32 %v312
    %v321 = vfloor.f32 %v313
    %v322 = vfloor.f32 %v314
    %v323 = vfloor.f32 %v315
    %v324 = vfloor.f32 %v316
    %v325 = vfloor.f32 %v317
    %v326 = vfloor.f32 %v318
    %v327 = vfloor.f32 %v319
    %v328 = vmul.f32 %v320, 2.0
    %v329 = vmul.f32 %v321, 2.0
    %v330 = vmul.f32 %v322, 2.0
    %v331 = vmul.f32 %v323, 2.0
    %v332 = vmul.f32 %v324, 2.0
    %v333 = vmul.f32 %v325, 2.0
    %v334 = vmul.f32 %v326, 2.0
    %v335 = vmul.f32 %v327, 2.0
    %v336 = vsub.f32 %v148, %v328
    %v337 = vsub.f32 %v271, %v329
    %v338 = vsub.f32 %v272, %v330
    %v339 = vsub.f32 %v273, %v331
    %v340 = vsub.f32 %v274, %v332
    %v341 = vsub.f32 %v275, %v333
    %v342 = vsub.f32 %v276, %v334
    %v343 = vsub.f32 %v277, %v335
    %v344 = vmul.f32 %v149, 0.5
    %v345 = vfloor.f32 %v344
    %v346 = vmul.f32 %v345, 2.0
    %v347 = vsub.f32 %v145, %v346
    %vm348 = vcmp.eq.f32.partialorder %v336, %v347
    %vm349 = vcmp.eq.f32.partialorder %v337, %v347
    %vm350 = vcmp.eq.f32.partialorder %v338, %v347
    %vm351 = vcmp.eq.f32.partialorder %v339, %v347
    %vm352 = vcmp.eq.f32.partialorder %v340, %v347
    %vm353 = vcmp.eq.f32.partialorder %v341, %v347
    %vm354 = vcmp.eq.f32.partialorder %v342, %v347
    %vm355 = vcmp.eq.f32.partialorder %v343, %v347
    %vm356 = vmand %vm304, %vm348
    %vm357 = vmand %vm305, %vm349
    %vm358 = vmand %vm306, %vm350
    %vm359 = vmand %vm307, %vm351
    %vm360 = vmand %vm308, %vm352
    %vm361 = vmand %vm309, %vm353
    %vm362 = vmand %vm310, %vm354
    %vm363 = vmand %vm311, %vm355
    %v364 = vsel %vm356, %v245, -1e+30
    %v365 = vsel %vm357, %v247, -1e+30
    %v366 = vsel %vm358, %v250, -1e+30
    %v367 = vsel %vm359, %v252, -1e+30
    %v368 = vsel %vm360, %v255, -1e+30
    %v369 = vsel %vm361, %v257, -1e+30
    %v370 = vsel %vm362, %v260, -1e+30
    %v371 = vsel %vm363, %v262, -1e+30
    %vm372 = vcmask 523264
    %v373 = vsel %vm372, %v364, -inf
    %374 = vmax.xlane.f32.xlu0 %v373
    %v375 = vpop.xlane.xlu0 %374
    %v376 = vsel %vm372, %v365, -inf
    %377 = vmax.xlane.f32.xlu0 %v376
    %v378 = vpop.xlane.xlu0 %377
    %v379 = vsel %vm372, %v366, -inf
    %380 = vmax.xlane.f32.xlu0 %v379
    %v381 = vpop.xlane.xlu0 %380
    %v382 = vsel %vm372, %v367, -inf
    %383 = vmax.xlane.f32.xlu0 %v382
    %v384 = vpop.xlane.xlu0 %383
    %v385 = vsel %vm372, %v368, -inf
    %386 = vmax.xlane.f32.xlu0 %v385
    %v387 = vpop.xlane.xlu0 %386
    %v388 = vsel %vm372, %v369, -inf
    %389 = vmax.xlane.f32.xlu0 %v388
    %v390 = vpop.xlane.xlu0 %389
    %v391 = vsel %vm372, %v370, -inf
    %392 = vmax.xlane.f32.xlu0 %v391
    %v393 = vpop.xlane.xlu0 %392
    %v394 = vsel %vm372, %v371, -inf
    %395 = vmax.xlane.f32.xlu0 %v394
    %v396 = vpop.xlane.xlu0 %395
    %v397 = vsub.f32 %v364, %v375
    %v398 = vsub.f32 %v365, %v378
    %v399 = vsub.f32 %v366, %v381
    %v400 = vsub.f32 %v367, %v384
    %v401 = vsub.f32 %v368, %v387
    %v402 = vsub.f32 %v369, %v390
    %v403 = vsub.f32 %v370, %v393
    %v404 = vsub.f32 %v371, %v396
    %v405 = vmul.f32 %v397, 1.442695
    %v406 = vpow.pop %v405
    %v407 = vmul.f32 %v398, 1.442695
    %v408 = vpow.pop %v407
    %v409 = vmul.f32 %v399, 1.442695
    %v410 = vpow.pop %v409
    %v411 = vmul.f32 %v400, 1.442695
    %v412 = vpow.pop %v411
    %v413 = vmul.f32 %v401, 1.442695
    %v414 = vpow.pop %v413
    %v415 = vmul.f32 %v402, 1.442695
    %v416 = vpow.pop %v415
    %v417 = vmul.f32 %v403, 1.442695
    %v418 = vpow.pop %v417
    %v419 = vmul.f32 %v404, 1.442695
    %v420 = vpow.pop %v419
    %v421 = vsel %vm372, %v406, 0.0
    %422 = vadd.xlane.f32.xlu0 %v421
    %v423 = vpop.xlane.xlu0 %422
    %v424 = vsel %vm372, %v408, 0.0
    %425 = vadd.xlane.f32.xlu0 %v424
    %v426 = vpop.xlane.xlu0 %425
    %v427 = vsel %vm372, %v410, 0.0
    %428 = vadd.xlane.f32.xlu0 %v427
    %v429 = vpop.xlane.xlu0 %428
    %v430 = vsel %vm372, %v412, 0.0
    %431 = vadd.xlane.f32.xlu0 %v430
    %v432 = vpop.xlane.xlu0 %431
    %v433 = vsel %vm372, %v414, 0.0
    %434 = vadd.xlane.f32.xlu0 %v433
    %v435 = vpop.xlane.xlu0 %434
    %v436 = vsel %vm372, %v416, 0.0
    %437 = vadd.xlane.f32.xlu0 %v436
    %v438 = vpop.xlane.xlu0 %437
    %v439 = vsel %vm372, %v418, 0.0
    %440 = vadd.xlane.f32.xlu0 %v439
    %v441 = vpop.xlane.xlu0 %440
    %v442 = vsel %vm372, %v420, 0.0
    %443 = vadd.xlane.f32.xlu0 %v442
    %v444 = vpop.xlane.xlu0 %443
    %v445 = vpack.c.bf16 %v408, %v406
    %v446 = vpack.c.bf16 %v412, %v410
    %v447 = vpack.c.bf16 %v416, %v414
    %v448 = vpack.c.bf16 %v420, %v418
    %v449 = vpack.c.bf16 %v196, %v195
    %v450 = vpack.c.bf16 %v198, %v197
    %v451 = vpack.c.bf16 %v200, %v199
    %v452 = vpack.c.bf16 %v202, %v201
    %457 = vrot.lane.b32.xlu0 %v449, 64
    %v458 = vpop.permute.xlu0 %457
    %459 = vrot.lane.b32.xlu0 %v450, 64
    %v460 = vpop.permute.xlu0 %459
    %461 = vrot.lane.b32.xlu0 %v451, 64
    %v462 = vpop.permute.xlu0 %461
    %463 = vrot.lane.b32.xlu0 %v452, 64
    %v464 = vpop.permute.xlu0 %463
    %v470 = vsel %vm372, %v445, 0
    %v473 = vsel %vm372, %v446, 0
    %v476 = vsel %vm372, %v447, 0
    %v479 = vsel %vm372, %v448, 0
    %481 = vmatpush.bf16.msra.mxu0 0
    %482 = vmatpush.bf16.msra.mxu0 0
    %483 = vmatpush.bf16.msra.mxu0 0
    %484 = vmatpush.bf16.msra.mxu0 0
    %485 = vmatpush.bf16.msra.mxu0 %v464
    %486 = vmatpush.bf16.msra.mxu0 %v462
    %487 = vmatpush.bf16.msra.mxu0 %v460
    %488 = vmatpush.bf16.msra.mxu0 %v458
    %489 = vmatmul.bf16.gmra.mxu0 %v470
    %v490 = vpop.f32.mrf.mxu0
    %v491 = vadd.f32 0.0, %v490
    %v492 = vpop.f32.mrf.mxu0
    %v493 = vadd.f32 0.0, %v492
    %494 = vmatmul.bf16.gmra.mxu0 %v473
    %v495 = vpop.f32.mrf.mxu0
    %v496 = vadd.f32 0.0, %v495
    %v497 = vpop.f32.mrf.mxu0
    %v498 = vadd.f32 0.0, %v497
    %499 = vmatmul.bf16.gmra.mxu0 %v476
    %v500 = vpop.f32.mrf.mxu0
    %v501 = vadd.f32 0.0, %v500
    %v502 = vpop.f32.mrf.mxu0
    %v503 = vadd.f32 0.0, %v502
    %504 = vmatmul.bf16.gmra.mxu0 %v479
    %v505 = vpop.f32.mrf.mxu0
    %v506 = vadd.f32 0.0, %v505
    %v507 = vpop.f32.mrf.mxu0
    %v508 = vadd.f32 0.0, %v507
    %509 = vdwg.mxu0
    %v510 = vrcp.pop %v423
    %v511 = vrcp.pop %v426
    %v512 = vrcp.pop %v429
    %v513 = vrcp.pop %v432
    %v514 = vrcp.pop %v435
    %v515 = vrcp.pop %v438
    %v516 = vrcp.pop %v441
    %v517 = vrcp.pop %v444
    %v518 = vmul.f32 %v491, %v510
    %v519 = vmul.f32 %v493, %v511
    %v520 = vmul.f32 %v496, %v512
    %v521 = vmul.f32 %v498, %v513
    %v522 = vmul.f32 %v501, %v514
    %v523 = vmul.f32 %v503, %v515
    %v524 = vmul.f32 %v506, %v516
    %v525 = vmul.f32 %v508, %v517
    %v526 = vsel %vm125, %v518, 0.0
    %v527 = vsel %vm125, %v520, 0.0
    %v528 = vadd.f32 %v526, %v527
    %v529 = vsel %vm125, %v522, 0.0
    %v530 = vadd.f32 %v528, %v529
    %v531 = vsel %vm125, %v524, 0.0
    %v532 = vadd.f32 %v530, %v531
    %v533 = vsel %vm125, %v519, 0.0
    %v534 = vsel %vm125, %v521, 0.0
    %v535 = vadd.f32 %v533, %v534
    %v536 = vsel %vm125, %v523, 0.0
    %v537 = vadd.f32 %v535, %v536
    %v538 = vsel %vm125, %v525, 0.0
    %v539 = vadd.f32 %v537, %v538
    %v540 = vpack.c.bf16 %v539, %v532
    %v541 = vld [vmem:[#allocation7] sm:$0xff]
    %v542 = vld [vmem:[#allocation7 + $0x8] sm:$0xff]
    %v543 = vld [vmem:[#allocation7 + $0x10] sm:$0xff]
    %v544 = vld [vmem:[#allocation7 + $0x18] sm:$0xff]
    %v545 = vld [vmem:[%s4] sm:$0x3]
    %v547 = vperm.slane %v545, 0
    %v548 = vperm.slane %v545, 1
    %v555 = vunpack.c.l.b16 %v541
    %v556 = vunpack.c.h.b16 %v541
    %v557 = vunpack.c.l.b16 %v542
    %v558 = vunpack.c.h.b16 %v542
    %v559 = vunpack.c.l.b16 %v543
    %v560 = vunpack.c.h.b16 %v543
    %v561 = vunpack.c.l.b16 %v544
    %v562 = vunpack.c.h.b16 %v544
    %v563 = vpack.c.b16 %v557, %v555
    %v564 = vpack.c.b16 %v558, %v556
    %v565 = vpack.c.b16 %v561, %v559
    %v566 = vpack.c.b16 %v562, %v560
    %v572 = vsel %vm125, %v540, 0
    %574 = vmatpush.bf16.msra.mxu0 0
    %575 = vmatpush.bf16.msra.mxu0 0
    %576 = vmatpush.bf16.msra.mxu0 0
    %577 = vmatpush.bf16.msra.mxu0 0
    %578 = vmatpush.bf16.msra.mxu0 0
    %579 = vmatpush.bf16.msra.mxu0 0
    %580 = vmatpush.bf16.msra.mxu0 %v565
    %581 = vmatpush.bf16.msra.mxu0 %v563
    %582 = vmatmul.bf16.gmra.mxu0 %v572
    %v583 = vpop.f32.mrf.mxu0
    %v584 = vadd.f32 %v547, %v583
    %v585 = vpop.f32.mrf.mxu0
    %v586 = vadd.f32 %v547, %v585
    %587 = vdwg.mxu0
    %588 = vmatpush.bf16.msra.mxu0 0
    %589 = vmatpush.bf16.msra.mxu0 0
    %590 = vmatpush.bf16.msra.mxu0 0
    %591 = vmatpush.bf16.msra.mxu0 0
    %592 = vmatpush.bf16.msra.mxu0 0
    %593 = vmatpush.bf16.msra.mxu0 0
    %594 = vmatpush.bf16.msra.mxu0 %v566
    %595 = vmatpush.bf16.msra.mxu0 %v564
    %596 = vmatmul.bf16.gmra.mxu0 %v572
    %v597 = vpop.f32.mrf.mxu0
    %v598 = vadd.f32 %v548, %v597
    %v599 = vpop.f32.mrf.mxu0
    %v600 = vadd.f32 %v548, %v599
    %601 = vdwg.mxu0
    %v602 = vmax.f32 %v584, 0.0
    %v603 = vmax.f32 %v598, 0.0
    %v604 = vmax.f32 %v586, 0.0
    %v605 = vmax.f32 %v600, 0.0
    %606 = vst [vmem:[#allocation8] sm:$0xff] %v602
    %607 = vst [vmem:[#allocation8 + $0x8] sm:$0xff] %v603
    %608 = vst [vmem:[#allocation8 + $0x10] sm:$0xff] %v604
    %609 = vst [vmem:[#allocation8 + $0x18] sm:$0xff] %v605
    // Predicated region
    $region34: #{tpu_custom_call.1} parent=1 // pred_check
      _
    $region35: #{tpu_custom_call.1} parent=1 // pred_check_branch
      %611 = sbr.rel (0) target = $region37
    $region36: #{tpu_custom_call.1} parent=1 // pred_region
      %613 = vsyncadd [#allocation4], 0
      %s614 = sshll.u32 [#allocation8], 4
      %s615 = int_to_ptr.vmem [resolvable:$true] %s614
      %s616 = sshll.u32 %s5, 4
      %s617 = int_to_ptr.hbm [resolvable:$true] %s616
      %622 = dma.vmem_to_hbm [thread:$0]  %s615, 512, %s617, [#allocation4], 256, 256, 16
    $region37: #{tpu_custom_call.1} parent=1 // pred_fallthru
      _
    // Predicated region
    $region38: #{tpu_custom_call.1} parent=1 // pred_check
      _
    $region39: #{tpu_custom_call.1} parent=1 // pred_check_branch
      %624 = sbr.rel (0) target = $region41
    $region40: #{tpu_custom_call.1} parent=1 // pred_region
      %626 = dma.done [#allocation4], 512
    $region41: #{tpu_custom_call.1} parent=1 // pred_fallthru
      _
    %627 = vsyncpa [#allocation3], 1
    %628 = vsyncpa [#allocation6], 1
    %629 = vsyncpa [#allocation4], 1

</llo_original>
